<compile_context>
chip_gen: v7x
topology: tpu7x:2x2x1
jax: 0.10.0
libtpu: 0.0.40
codegen_flags: <defaults>
</compile_context>

<pallas_src>
import functools

import jax
import jax.numpy as jnp
from jax.experimental import pallas as pl
from jax.experimental.pallas import tpu as pltpu


_NEG_BIG = -1e30   # finite "-inf": exp() underflows to exactly 0, and * 0.0 == 0.0


def _ct_offset(t):
    """Lane offset (multiple of 32) of ct inside the merged output slab."""
    return ((t + 31) // 32) * 32


def _slab_width(t, hd):
    off = _ct_offset(t)
    return ((off + hd + 127) // 128) * 128


def _context_atten_kernel(x_ref, hcs_ref, wm_ref, w1t_ref, mask_ref, out_ref, *,
                          n_steps, t, hd, ct_off, width):
    x = x_ref[...]                       # (T, H)     inputs timeline, resident
    hcs = hcs_ref[...]                   # (S, 1, H)  all hidden states, resident
    wm = wm_ref[...]                     # (H, H)
    w1t = w1t_ref[...]                   # (H, H)     linear1.weight^T
    band = mask_ref[...]                 # (S, 1, T)  {0,1} sliding-window mask

    # inputs @ Wm once, shared by every step of the band.
    g = jnp.dot(x, wm, preferred_element_type=jnp.float32)             # (T, H)

    # lin_s = hc_s @ W1^T, batched over steps (flash 'bqk,bkd->bqd' pattern).
    w1t_b = jnp.broadcast_to(w1t[None, :, :], (n_steps, hd, hd))
    lin = jnp.einsum('soh,shk->sok', hcs, w1t_b,
                     preferred_element_type=jnp.float32)                # (S, 1, H)

    # tanh(window@Wm + ones(CW,1)@lin) for every (step, position) pair.
    th = jnp.tanh(g[None, :, :] + lin)                                  # (S, T, H)

    # At: the `@ ones(H,1)` row-sum, done on the MXU as ones(1,H) @ th^T per
    # step (flash 'bqd,bkd->bqk') so the scores land lane-major on the timeline.
    ones_b = jnp.ones((n_steps, 1, hd), jnp.float32)
    at = jnp.einsum('soh,sth->sot', ones_b, th,
                    preferred_element_type=jnp.float32)                 # (S, 1, T)

    # Masked, numerically-stable log-softmax over each step's context window.
    masked = jnp.where(band > 0.5, at, jnp.float32(_NEG_BIG))
    m = jnp.max(masked, axis=-1, keepdims=True)                         # (S, 1, 1)
    shifted = masked - m
    denom = jnp.sum(jnp.exp(shifted), axis=-1, keepdims=True)           # (S, 1, 1)
    alphat = shifted - jnp.log(denom)                                   # (S, 1, T)

    # ct = alphat @ window: banded log-prob weights (exact zeros outside the
    # window) contracted against the resident timeline (flash 'bqk,bkd->bqd').
    ct_w = alphat * band                                                # (S, 1, T)
    x_b = jnp.broadcast_to(x[None, :, :], (n_steps, t, hd))
    ct = jnp.einsum('sot,sth->soh', ct_w, x_b,
                    preferred_element_type=jnp.float32)                 # (S, 1, H)

    # Single lane-dense merged output slab: [ alphat | pad | ct | pad ].
    out_ref[...] = jnp.zeros((n_steps, 1, width), jnp.float32)
    out_ref[:, :, 0:t] = alphat
    out_ref[:, :, ct_off:ct_off + hd] = ct


def _build_call(t, n_steps, hd):
    ct_off = _ct_offset(t)
    width = _slab_width(t, hd)
    kernel = functools.partial(_context_atten_kernel, n_steps=n_steps, t=t,
                               hd=hd, ct_off=ct_off, width=width)
    call = pl.pallas_call(
        kernel,
        grid=(1,),                                                # single invocation
        in_specs=[
            pl.BlockSpec((t, hd), lambda i: (0, 0)),              # inputs timeline
            pl.BlockSpec((n_steps, 1, hd), lambda i: (0, 0, 0)),  # all hidden states
            pl.BlockSpec((hd, hd), lambda i: (0, 0)),             # Wm
            pl.BlockSpec((hd, hd), lambda i: (0, 0)),             # W1^T
            pl.BlockSpec((n_steps, 1, t), lambda i: (0, 0, 0)),   # banded mask
        ],
        out_specs=pl.BlockSpec((n_steps, 1, width), lambda i: (0, 0, 0)),
        out_shape=jax.ShapeDtypeStruct((n_steps, 1, width), jnp.float32),
        compiler_params=pltpu.CompilerParams(
            dimension_semantics=("arbitrary",)),                  # no megacore split
    )
    return call, ct_off


@functools.partial(jax.jit, static_argnames=("context_window",))
def context_atten(inputs, hc, wm, w1t, *, context_window):
    """Single forward, identical to the PyTorch module.

    inputs: (T, 1, H) seq-major, batch 1; hc: anything with H elements;
    w1t: linear1.weight^T (transposed ONCE at parameter setup, not per call).
    Returns (alphat (1, CW), ct (1, H)).
    """
    cw = context_window
    hd = wm.shape[0]
    window = inputs[-cw:].reshape(cw, hd)
    band = jnp.ones((1, 1, cw), jnp.float32)        # single step: full window
    call, ct_off = _build_call(cw, 1, hd)
    slab = call(window, hc.reshape(1, 1, hd), wm, w1t, band)      # (1, 1, width)
    return slab[0, :, 0:cw], slab[0, :, ct_off:ct_off + hd]


@functools.partial(jax.jit, static_argnames=("context_window",))
def context_atten_sequence(inputs, hcs, wm, w1t, *, context_window):
    """ALL timesteps in one kernel invocation (no per-step grid).

    Step s attends over inputs[s : s+CW] with hidden state hcs[s]; the last
    step equals the module's `inputs[-CW:]` forward.
    inputs: (T, 1, H) or (T, H); hcs: (n_steps, H) with n_steps = T - CW + 1.
    Returns (alphat (n_steps, CW), ct (n_steps, H)).
    """
    cw = context_window
    hd = wm.shape[0]
    t = inputs.shape[0]
    n_steps = t - cw + 1
    x = inputs.reshape(t, hd)
    steps = jnp.arange(n_steps, dtype=jnp.int32)[:, None, None]
    pos = jnp.arange(t, dtype=jnp.int32)[None, None, :]
    band = ((pos >= steps) & (pos < steps + cw)).astype(jnp.float32)   # (S, 1, T)
    call, ct_off = _build_call(t, n_steps, hd)
    slab = call(x, hcs.reshape(n_steps, 1, hd), wm, w1t, band)         # (S, 1, width)
    ct = slab[:, 0, ct_off:ct_off + hd]                                # (S, H)
    # Re-window alphat: step s's window lives in lanes [s, s+CW) of its row.
    idx = jnp.arange(n_steps)[:, None] + jnp.arange(cw)[None, :]
    alphat = jnp.take_along_axis(slab[:, 0, 0:t], idx, axis=1)         # (S, CW)
    return alphat, ct


def _reference_step(window, hc, wm, w1):
    """Pure-JAX reference for one PyTorch forward over `window` (CW, H)."""
    hd = wm.shape[0]
    lin = hc.reshape(1, hd) @ w1.T
    at = jnp.tanh(window @ wm + lin) @ jnp.ones((hd, 1), jnp.float32)   # (CW, 1)
    alphat = jax.nn.log_softmax(at.reshape(1, -1), axis=1)              # (1, CW)
    ct = alphat @ window                                                # (1, H)
    return alphat, ct


if __name__ == "__main__":
    HIDDEN_DIM = 32
    CONTEXT_WINDOW = 30          # matches the `context_window = 30` global in the spec
    T = 40                       # sequence length (>= context window)
    N_STEPS = T - CONTEXT_WINDOW + 1

    key = jax.random.PRNGKey(0)
    k_in, k_hc, k_w1 = jax.random.split(key, 3)

    # Module parameters (deterministic, matching __init__ shapes):
    wm = jnp.ones((HIDDEN_DIM, HIDDEN_DIM), jnp.float32)        # nn.Parameter ones
    v_param = jnp.ones((HIDDEN_DIM, 1), jnp.float32)            # unused by forward()
    w1 = (jax.random.uniform(k_w1, (HIDDEN_DIM, HIDDEN_DIM), jnp.float32,
                             minval=-1.0, maxval=1.0)
          / jnp.sqrt(HIDDEN_DIM))                               # linear1.weight
    w1t = w1.T       # hoisted ONCE at parameter setup, not per forward call

    inputs = jax.random.normal(k_in, (T, 1, HIDDEN_DIM), jnp.float32)
    hcs = jax.random.normal(k_hc, (N_STEPS, HIDDEN_DIM), jnp.float32)

    tol = dict(atol=1e-4, rtol=1e-4)   # f32 MXU matmuls + masked-softmax reorder

    # --- single forward (exactly the PyTorch module) ------------------------
    alphat, ct = context_atten(inputs, hcs[-1], wm, w1t,
                               context_window=CONTEXT_WINDOW)
    jax.block_until_ready((alphat, ct))
    ref_a, ref_c = _reference_step(
        inputs[-CONTEXT_WINDOW:].reshape(CONTEXT_WINDOW, HIDDEN_DIM),
        hcs[-1], wm, w1)
    assert alphat.shape == (1, CONTEXT_WINDOW) and ct.shape == (1, HIDDEN_DIM)
    assert jnp.allclose(alphat, ref_a, **tol)
    assert jnp.allclose(ct, ref_c, **tol)

    # --- whole per-timestep loop folded into ONE kernel invocation ----------
    alphat_seq, ct_seq = context_atten_sequence(
        inputs, hcs, wm, w1t, context_window=CONTEXT_WINDOW)
    jax.block_until_ready((alphat_seq, ct_seq))
    assert alphat_seq.shape == (N_STEPS, CONTEXT_WINDOW)
    assert ct_seq.shape == (N_STEPS, HIDDEN_DIM)
    for s in range(N_STEPS):
        ra, rc = _reference_step(
            inputs[s:s + CONTEXT_WINDOW].reshape(CONTEXT_WINDOW, HIDDEN_DIM),
            hcs[s], wm, w1)
        assert jnp.allclose(alphat_seq[s], ra[0], **tol)
        assert jnp.allclose(ct_seq[s], rc[0], **tol)

    print("KERNEL_OK")
</pallas_src>

<mosaic_0001>
module attributes {stable_mosaic.version = 11 : i64} {
  func.func @_context_atten_kernel(%arg0: i32, %arg1: memref<30x32xf32, #tpu.memory_space<vmem>>, %arg2: memref<1x1x32xf32, #tpu.memory_space<vmem>>, %arg3: memref<32x32xf32, #tpu.memory_space<vmem>>, %arg4: memref<32x32xf32, #tpu.memory_space<vmem>>, %arg5: memref<1x1x30xf32, #tpu.memory_space<vmem>>, %arg6: memref<1x1x128xf32, #tpu.memory_space<vmem>>) attributes {dimension_semantics = [#tpu.dimension_semantics<arbitrary>], iteration_bounds = array<i64: 1>, scalar_prefetch = 0 : i64, scratch_operands = 0 : i64, tpu.core_type = #tpu.core_type<tc>, window_params = [{pipeline_mode = #tpu.pipeline_mode<synchronous>, transform_indices = @transform_0, window_bounds = array<i64: 30, 32>}, {pipeline_mode = #tpu.pipeline_mode<synchronous>, transform_indices = @transform_1, window_bounds = array<i64: 1, 1, 32>}, {pipeline_mode = #tpu.pipeline_mode<synchronous>, transform_indices = @transform_2, window_bounds = array<i64: 32, 32>}, {pipeline_mode = #tpu.pipeline_mode<synchronous>, transform_indices = @transform_3, window_bounds = array<i64: 32, 32>}, {pipeline_mode = #tpu.pipeline_mode<synchronous>, transform_indices = @transform_4, window_bounds = array<i64: 1, 1, 30>}, {pipeline_mode = #tpu.pipeline_mode<synchronous>, transform_indices = @transform_5, window_bounds = array<i64: 1, 1, 128>}]} {
    %c0 = arith.constant 0 : index
    %c0_0 = arith.constant 0 : index
    %0 = vector.load %arg1[%c0, %c0_0] : memref<30x32xf32, #tpu.memory_space<vmem>>, vector<30x32xf32>
    %c0_1 = arith.constant 0 : index
    %c0_2 = arith.constant 0 : index
    %c0_3 = arith.constant 0 : index
    %1 = vector.load %arg2[%c0_1, %c0_2, %c0_3] : memref<1x1x32xf32, #tpu.memory_space<vmem>>, vector<1x1x32xf32>
    %c0_4 = arith.constant 0 : index
    %c0_5 = arith.constant 0 : index
    %2 = vector.load %arg3[%c0_4, %c0_5] : memref<32x32xf32, #tpu.memory_space<vmem>>, vector<32x32xf32>
    %c0_6 = arith.constant 0 : index
    %c0_7 = arith.constant 0 : index
    %3 = vector.load %arg4[%c0_6, %c0_7] : memref<32x32xf32, #tpu.memory_space<vmem>>, vector<32x32xf32>
    %c0_8 = arith.constant 0 : index
    %c0_9 = arith.constant 0 : index
    %c0_10 = arith.constant 0 : index
    %4 = vector.load %arg5[%c0_8, %c0_9, %c0_10] : memref<1x1x30xf32, #tpu.memory_space<vmem>>, vector<1x1x30xf32>
    %cst = arith.constant dense<0.000000e+00> : vector<30x32xf32>
    %5 = tpu.matmul %0, %2, %cst {dimension_numbers = #tpu.dot_dimension_numbers<[1], [0], [0], [1], [0, 0, 1, 1], [], []>} : vector<30x32xf32>, vector<32x32xf32>, vector<30x32xf32> -> vector<30x32xf32>
    %6 = vector.shape_cast %3 : vector<32x32xf32> to vector<1x32x32xf32>
    "tpu.trace_start"() <{level = 10 : i32, message = "soh,shk->sok"}> : () -> ()
    %cst_11 = arith.constant dense<0.000000e+00> : vector<1x1x32xf32>
    %7 = tpu.matmul %1, %6, %cst_11 {dimension_numbers = #tpu.dot_dimension_numbers<[2], [1], [1], [2], [0, 0, 0, 1, 1, 2], [0], [0]>} : vector<1x1x32xf32>, vector<1x32x32xf32>, vector<1x1x32xf32> -> vector<1x1x32xf32>
    "tpu.trace_stop"() : () -> ()
    %8 = vector.shape_cast %5 : vector<30x32xf32> to vector<1x30x32xf32>
    %9 = vector.broadcast %7 : vector<1x1x32xf32> to vector<1x30x32xf32>
    %10 = arith.addf %8, %9 : vector<1x30x32xf32>
    %11 = math.tanh %10 : vector<1x30x32xf32>
    %cst_12 = arith.constant 1.000000e+00 : f32
    %12 = vector.broadcast %cst_12 : f32 to vector<1x1x32xf32>
    "tpu.trace_start"() <{level = 10 : i32, message = "soh,sth->sot"}> : () -> ()
    %cst_13 = arith.constant dense<0.000000e+00> : vector<1x1x30xf32>
    %13 = tpu.matmul %12, %11, %cst_13 {dimension_numbers = #tpu.dot_dimension_numbers<[2], [2], [1], [1], [0, 0, 0, 1, 1, 1], [0], [0]>} : vector<1x1x32xf32>, vector<1x30x32xf32>, vector<1x1x30xf32> -> vector<1x1x30xf32>
    %cst_14 = arith.constant 5.000000e-01 : f32
    "tpu.trace_stop"() : () -> ()
    %14 = vector.broadcast %cst_14 : f32 to vector<1x1x30xf32>
    %15 = arith.cmpf ogt, %4, %14 : vector<1x1x30xf32>
    %cst_15 = arith.constant -1.000000e+30 : f32
    %16 = vector.broadcast %cst_15 : f32 to vector<1x1x30xf32>
    %17 = arith.select %15, %13, %16 : vector<1x1x30xi1>, vector<1x1x30xf32>
    %cst_16 = arith.constant dense<0xFF800000> : vector<1x1xf32>
    %18 = vector.multi_reduction <maximumf>, %17, %cst_16 [2] : vector<1x1x30xf32> to vector<1x1xf32>
    %19 = vector.shape_cast %18 : vector<1x1xf32> to vector<1x1x1xf32>
    %20 = vector.broadcast %19 : vector<1x1x1xf32> to vector<1x1x30xf32>
    %21 = arith.subf %17, %20 : vector<1x1x30xf32>
    %22 = math.exp %21 : vector<1x1x30xf32>
    %cst_17 = arith.constant dense<0.000000e+00> : vector<1x1xf32>
    %23 = vector.multi_reduction <add>, %22, %cst_17 [2] : vector<1x1x30xf32> to vector<1x1xf32>
    %24 = vector.shape_cast %23 : vector<1x1xf32> to vector<1x1x1xf32>
    %25 = math.log %24 : vector<1x1x1xf32>
    %26 = vector.broadcast %25 : vector<1x1x1xf32> to vector<1x1x30xf32>
    %27 = arith.subf %21, %26 : vector<1x1x30xf32>
    %28 = arith.mulf %27, %4 : vector<1x1x30xf32>
    %29 = vector.shape_cast %0 : vector<30x32xf32> to vector<1x30x32xf32>
    "tpu.trace_start"() <{level = 10 : i32, message = "sot,sth->soh"}> : () -> ()
    %cst_18 = arith.constant dense<0.000000e+00> : vector<1x1x32xf32>
    %30 = tpu.matmul %28, %29, %cst_18 {dimension_numbers = #tpu.dot_dimension_numbers<[2], [1], [1], [2], [0, 0, 0, 1, 1, 2], [0], [0]>} : vector<1x1x30xf32>, vector<1x30x32xf32>, vector<1x1x32xf32> -> vector<1x1x32xf32>
    %cst_19 = arith.constant 0.000000e+00 : f32
    "tpu.trace_stop"() : () -> ()
    %31 = vector.broadcast %cst_19 : f32 to vector<1x1x128xf32>
    %c0_20 = arith.constant 0 : index
    %c0_21 = arith.constant 0 : index
    %c0_22 = arith.constant 0 : index
    %32 = vector.load %arg6[%c0_20, %c0_21, %c0_22] : memref<1x1x128xf32, #tpu.memory_space<vmem>>, vector<1x1x128xf32>
    tpu.vector_store %arg6[%c0_20, %c0_21, %c0_22], %31 {strides = array<i32>} : memref<1x1x128xf32, #tpu.memory_space<vmem>>, vector<1x1x128xf32>,
    %c0_23 = arith.constant 0 : index
    %c0_24 = arith.constant 0 : index
    %c0_25 = arith.constant 0 : index
    %33 = vector.load %arg6[%c0_23, %c0_24, %c0_25] : memref<1x1x128xf32, #tpu.memory_space<vmem>>, vector<1x1x30xf32>
    tpu.vector_store %arg6[%c0_23, %c0_24, %c0_25], %27 {strides = array<i32>} : memref<1x1x128xf32, #tpu.memory_space<vmem>>, vector<1x1x30xf32>,
    %c0_26 = arith.constant 0 : index
    %c0_27 = arith.constant 0 : index
    %c32 = arith.constant 32 : index
    %34 = vector.load %arg6[%c0_26, %c0_27, %c32] : memref<1x1x128xf32, #tpu.memory_space<vmem>>, vector<1x1x32xf32>
    tpu.vector_store %arg6[%c0_26, %c0_27, %c32], %30 {strides = array<i32>} : memref<1x1x128xf32, #tpu.memory_space<vmem>>, vector<1x1x32xf32>,
    return
  }
  func.func @transform_0(%arg0: i32) -> (i32, i32) {
    %c0_i32 = arith.constant 0 : i32
    %c0_i32_0 = arith.constant 0 : i32
    %c0_i32_1 = arith.constant 0 : i32
    return %c0_i32, %c0_i32_0 : i32, i32
  }
  func.func @transform_1(%arg0: i32) -> (i32, i32, i32) {
    %c0_i32 = arith.constant 0 : i32
    %c0_i32_0 = arith.constant 0 : i32
    %c0_i32_1 = arith.constant 0 : i32
    %c0_i32_2 = arith.constant 0 : i32
    return %c0_i32, %c0_i32_0, %c0_i32_1 : i32, i32, i32
  }
  func.func @transform_2(%arg0: i32) -> (i32, i32) {
    %c0_i32 = arith.constant 0 : i32
    %c0_i32_0 = arith.constant 0 : i32
    %c0_i32_1 = arith.constant 0 : i32
    return %c0_i32, %c0_i32_0 : i32, i32
  }
  func.func @transform_3(%arg0: i32) -> (i32, i32) {
    %c0_i32 = arith.constant 0 : i32
    %c0_i32_0 = arith.constant 0 : i32
    %c0_i32_1 = arith.constant 0 : i32
    return %c0_i32, %c0_i32_0 : i32, i32
  }
  func.func @transform_4(%arg0: i32) -> (i32, i32, i32) {
    %c0_i32 = arith.constant 0 : i32
    %c0_i32_0 = arith.constant 0 : i32
    %c0_i32_1 = arith.constant 0 : i32
    %c0_i32_2 = arith.constant 0 : i32
    return %c0_i32, %c0_i32_0, %c0_i32_1 : i32, i32, i32
  }
  func.func @transform_5(%arg0: i32) -> (i32, i32, i32) {
    %c0_i32 = arith.constant 0 : i32
    %c0_i32_0 = arith.constant 0 : i32
    %c0_i32_1 = arith.constant 0 : i32
    %c0_i32_2 = arith.constant 0 : i32
    return %c0_i32, %c0_i32_0, %c0_i32_1 : i32, i32, i32
  }
}

</mosaic_0001>

<llo_original>
// kernel: context_atten.1
$region0: #{context_atten.1}
  #allocation0 [shape = 'u32[]', space=smem, size = 0x4, offset = 0x4, fixed_abs, tag = 'smem constant byte address 0x4 - core index']
  #allocation1 [shape = 'u32[144,128]{1,0:T(1,128)}', space=vmem, size = 0x12000, scoped, tag = 'internal scratch']
  %s0 = inlined_call_operand.vmem [shape: f32[30,32], index: 0, kind: input, shape index: {}]
  %s1 = inlined_call_operand.vmem [shape: f32[1,1,32], index: 1, kind: input, shape index: {}]
  %s2 = inlined_call_operand.vmem [shape: f32[32,32], index: 2, kind: input, shape index: {}]
  %s3 = inlined_call_operand.vmem [shape: f32[32,32], index: 3, kind: input, shape index: {}]
  %s4 = inlined_call_operand.vmem [shape: f32[1,1,30], index: 4, kind: input, shape index: {}]
  %s5 = inlined_call_operand.vmem [shape: f32[1,1,128], index: 5, kind: output, shape index: {}]
  %s6 = sld [smem:[#allocation0]]
  $region30: #{context_atten.1} parent=0
    _
  %s8 = ssub.s32 1, %s6
  %s9 = scalar_select 0, %s8, %s6
  // Predicated region
  $region2: #{context_atten.1} parent=0 // pred_check
    _
  $region3: #{context_atten.1} parent=0 // pred_check_branch
    %11 = sbr.rel (0) target = $region5
  $region4: #{context_atten.1} parent=0 // pred_region
    _
  $region5: #{context_atten.1} parent=0 // pred_fallthru
    _
  // Predicated region
  $region6: #{context_atten.1} parent=0 // pred_check
    _
  $region7: #{context_atten.1} parent=0 // pred_check_branch
    %13 = sbr.rel (0) target = $region9
  $region8: #{context_atten.1} parent=0 // pred_region
    _
  $region9: #{context_atten.1} parent=0 // pred_fallthru
    _
  // Predicated region
  $region10: #{context_atten.1} parent=0 // pred_check
    _
  $region11: #{context_atten.1} parent=0 // pred_check_branch
    %15 = sbr.rel (0) target = $region13
  $region12: #{context_atten.1} parent=0 // pred_region
    _
  $region13: #{context_atten.1} parent=0 // pred_fallthru
    _
  // Predicated region
  $region14: #{context_atten.1} parent=0 // pred_check
    _
  $region15: #{context_atten.1} parent=0 // pred_check_branch
    %17 = sbr.rel (0) target = $region17
  $region16: #{context_atten.1} parent=0 // pred_region
    _
  $region17: #{context_atten.1} parent=0 // pred_fallthru
    _
  // Predicated region
  $region18: #{context_atten.1} parent=0 // pred_check
    _
  $region19: #{context_atten.1} parent=0 // pred_check_branch
    %19 = sbr.rel (0) target = $region21
  $region20: #{context_atten.1} parent=0 // pred_region
    _
  $region21: #{context_atten.1} parent=0 // pred_fallthru
    _
  %v20 = vld [vmem:[%s0] sm:$0xff]
  %v21 = vld [vmem:[%s0 + $0x8] sm:$0xff]
  %v22 = vld [vmem:[%s0 + $0x10] sm:$0xff]
  %v23 = vld [vmem:[%s0 + $0x18] sm:$0x3f]
  %v24 = vld [vmem:[%s1] sm:$0x1]
  %v25 = vld [vmem:[%s2] sm:$0xff]
  %v26 = vld [vmem:[%s2 + $0x8] sm:$0xff]
  %v27 = vld [vmem:[%s2 + $0x10] sm:$0xff]
  %v28 = vld [vmem:[%s2 + $0x18] sm:$0xff]
  %v29 = vld [vmem:[%s3] sm:$0xff]
  %v30 = vld [vmem:[%s3 + $0x8] sm:$0xff]
  %v31 = vld [vmem:[%s3 + $0x10] sm:$0xff]
  %v32 = vld [vmem:[%s3 + $0x18] sm:$0xff]
  %v33 = vld [vmem:[%s4] sm:$0x1]
  %vm34 = vcmask 261120
  %v36 = vsel %vm34, %v20, 0
  %v39 = vsel %vm34, %v21, 0
  %v42 = vsel %vm34, %v22, 0
  %v45 = vsel %vm34, %v23, 0
  %47 = vmatprep.subr.mxu0 0.0
  %48 = vmatpush1.msra.mxu0 %v25
  %49 = vmatprep.subr.mxu0 0.0
  %50 = vmatpush1.msra.mxu0 %v26
  %51 = vmatprep.subr.mxu0 0.0
  %52 = vmatpush1.msra.mxu0 %v27
  %53 = vmatprep.subr.mxu0 0.0
  %54 = vmatpush1.msra.mxu0 %v28
  %55 = vmatprep.subr.mxu0 0.0
  %56 = vmatpush1.msra.mxu0 0.0
  %57 = vmatprep.subr.mxu0 0.0
  %58 = vmatpush1.msra.mxu0 0.0
  %59 = vmatprep.subr.mxu0 0.0
  %60 = vmatpush1.msra.mxu0 0.0
  %61 = vmatprep.subr.mxu0 0.0
  %62 = vmatpush1.msra.mxu0 0.0
  %63 = vmatprep.subr.mxu0 0.0
  %64 = vmatpush1.msra.mxu0 0.0
  %65 = vmatprep.subr.mxu0 0.0
  %66 = vmatpush1.msra.mxu0 0.0
  %67 = vmatprep.subr.mxu0 0.0
  %68 = vmatpush1.msra.mxu0 0.0
  %69 = vmatprep.subr.mxu0 0.0
  %70 = vmatpush1.msra.mxu0 0.0
  %71 = vmatprep.subr.mxu0 0.0
  %72 = vmatpush1.msra.mxu0 0.0
  %73 = vmatprep.subr.mxu0 0.0
  %74 = vmatpush1.msra.mxu0 0.0
  %75 = vmatprep.subr.mxu0 0.0
  %76 = vmatpush1.msra.mxu0 0.0
  %77 = vmatprep.subr.mxu0 0.0
  %78 = vmatpush1.msra.mxu0 0.0
  %79 = vmatprep.subr.mxu0 0.0
  %80 = vmatpush1.msra.mxu0 0.0
  %81 = vmatprep.subr.mxu0 0.0
  %82 = vmatpush1.msra.mxu0 0.0
  %83 = vmatprep.subr.mxu0 0.0
  %84 = vmatpush1.msra.mxu0 0.0
  %85 = vmatprep.subr.mxu0 0.0
  %86 = vmatpush1.msra.mxu0 0.0
  %87 = vmatprep.subr.mxu0 0.0
  %88 = vmatpush1.msra.mxu0 0.0
  %89 = vmatprep.subr.mxu0 0.0
  %90 = vmatpush1.msra.mxu0 0.0
  %91 = vmatprep.subr.mxu0 0.0
  %92 = vmatpush1.msra.mxu0 0.0
  %93 = vmatprep.subr.mxu0 0.0
  %94 = vmatpush1.msra.mxu0 0.0
  %95 = vmatprep.subr.mxu0 0.0
  %96 = vmatpush1.msra.mxu0 0.0
  %97 = vmatprep.subr.mxu0 0.0
  %98 = vmatpush1.msra.mxu0 0.0
  %99 = vmatprep.subr.mxu0 0.0
  %100 = vmatpush1.msra.mxu0 0.0
  %101 = vmatprep.subr.mxu0 0.0
  %102 = vmatpush1.msra.mxu0 0.0
  %103 = vmatprep.subr.mxu0 0.0
  %104 = vmatpush1.msra.mxu0 0.0
  %105 = vmatprep.subr.mxu0 0.0
  %106 = vmatpush1.msra.mxu0 0.0
  %107 = vmatprep.subr.mxu0 0.0
  %108 = vmatpush1.msra.mxu0 0.0
  %109 = vmatprep.subr.mxu0 0.0
  %110 = vmatpush1.msra.mxu0 0.0
  %111 = vmatprep.mubr.f32.mxu0 0.0
  %112 = vmatmul.mubr.f32.gmra.mrb[0].mxu0 %v36
  %v113 = vpop.f32.mrb[0].mxu0
  %v114 = vadd.f32 0.0, %v113
  %v115 = vpop.f32.mrb[0].mxu0
  %116 = vmatprep.mubr.f32.mxu0 0.0
  %117 = vmatmul.mubr.f32.gmra.mrb[0].mxu0 %v39
  %v118 = vpop.f32.mrb[0].mxu0
  %v119 = vadd.f32 0.0, %v118
  %v120 = vpop.f32.mrb[0].mxu0
  %121 = vmatprep.mubr.f32.mxu0 0.0
  %122 = vmatmul.mubr.f32.gmra.mrb[0].mxu0 %v42
  %v123 = vpop.f32.mrb[0].mxu0
  %v124 = vadd.f32 0.0, %v123
  %v125 = vpop.f32.mrb[0].mxu0
  %126 = vmatprep.mubr.f32.mxu0 0.0
  %127 = vmatmul.mubr.f32.gmra.mrb[0].mxu0 %v45
  %v128 = vpop.f32.mrb[0].mxu0
  %v129 = vadd.f32 0.0, %v128
  %v130 = vpop.f32.mrb[0].mxu0
  %131 = vdwg.mxu0
  %v133 = vsel %vm34, %v24, 0
  %135 = vmatprep.subr.mxu0 0.0
  %136 = vmatpush1.msra.mxu0 %v29
  %137 = vmatprep.subr.mxu0 0.0
  %138 = vmatpush1.msra.mxu0 %v30
  %139 = vmatprep.subr.mxu0 0.0
  %140 = vmatpush1.msra.mxu0 %v31
  %141 = vmatprep.subr.mxu0 0.0
  %142 = vmatpush1.msra.mxu0 %v32
  %143 = vmatprep.subr.mxu0 0.0
  %144 = vmatpush1.msra.mxu0 0.0
  %145 = vmatprep.subr.mxu0 0.0
  %146 = vmatpush1.msra.mxu0 0.0
  %147 = vmatprep.subr.mxu0 0.0
  %148 = vmatpush1.msra.mxu0 0.0
  %149 = vmatprep.subr.mxu0 0.0
  %150 = vmatpush1.msra.mxu0 0.0
  %151 = vmatprep.subr.mxu0 0.0
  %152 = vmatpush1.msra.mxu0 0.0
  %153 = vmatprep.subr.mxu0 0.0
  %154 = vmatpush1.msra.mxu0 0.0
  %155 = vmatprep.subr.mxu0 0.0
  %156 = vmatpush1.msra.mxu0 0.0
  %157 = vmatprep.subr.mxu0 0.0
  %158 = vmatpush1.msra.mxu0 0.0
  %159 = vmatprep.subr.mxu0 0.0
  %160 = vmatpush1.msra.mxu0 0.0
  %161 = vmatprep.subr.mxu0 0.0
  %162 = vmatpush1.msra.mxu0 0.0
  %163 = vmatprep.subr.mxu0 0.0
  %164 = vmatpush1.msra.mxu0 0.0
  %165 = vmatprep.subr.mxu0 0.0
  %166 = vmatpush1.msra.mxu0 0.0
  %167 = vmatprep.subr.mxu0 0.0
  %168 = vmatpush1.msra.mxu0 0.0
  %169 = vmatprep.subr.mxu0 0.0
  %170 = vmatpush1.msra.mxu0 0.0
  %171 = vmatprep.subr.mxu0 0.0
  %172 = vmatpush1.msra.mxu0 0.0
  %173 = vmatprep.subr.mxu0 0.0
  %174 = vmatpush1.msra.mxu0 0.0
  %175 = vmatprep.subr.mxu0 0.0
  %176 = vmatpush1.msra.mxu0 0.0
  %177 = vmatprep.subr.mxu0 0.0
  %178 = vmatpush1.msra.mxu0 0.0
  %179 = vmatprep.subr.mxu0 0.0
  %180 = vmatpush1.msra.mxu0 0.0
  %181 = vmatprep.subr.mxu0 0.0
  %182 = vmatpush1.msra.mxu0 0.0
  %183 = vmatprep.subr.mxu0 0.0
  %184 = vmatpush1.msra.mxu0 0.0
  %185 = vmatprep.subr.mxu0 0.0
  %186 = vmatpush1.msra.mxu0 0.0
  %187 = vmatprep.subr.mxu0 0.0
  %188 = vmatpush1.msra.mxu0 0.0
  %189 = vmatprep.subr.mxu0 0.0
  %190 = vmatpush1.msra.mxu0 0.0
  %191 = vmatprep.subr.mxu0 0.0
  %192 = vmatpush1.msra.mxu0 0.0
  %193 = vmatprep.subr.mxu0 0.0
  %194 = vmatpush1.msra.mxu0 0.0
  %195 = vmatprep.subr.mxu0 0.0
  %196 = vmatpush1.msra.mxu0 0.0
  %197 = vmatprep.subr.mxu0 0.0
  %198 = vmatpush1.msra.mxu0 0.0
  %199 = vmatprep.mubr.f32.mxu0 0.0
  %200 = vmatmul.mubr.f32.gmra.mrb[0].mxu0 %v133
  %v201 = vpop.f32.mrb[0].mxu0
  %v202 = vadd.f32 0.0, %v201
  %v203 = vpop.f32.mrb[0].mxu0
  %204 = vdwg.mxu0
  %v205 = vlaneseq
  %v206 = vshrl.u32 %v205, 7
  %v207 = vsub.s32 0, %v206
  %v208 = vrot.slane %v202, %v207
  %v209 = vadd.f32 %v114, %v208
  %v210 = vadd.f32 %v119, %v208
  %v211 = vadd.f32 %v124, %v208
  %v212 = vadd.f32 %v129, %v208
  %v213 = vtanh.pop %v209
  %v214 = vtanh.pop %v210
  %v215 = vtanh.pop %v211
  %v216 = vtanh.pop %v212
  %v218 = vsel %vm34, 1.0, 0
  %v221 = vsel %vm34, %v213, 0
  %v224 = vsel %vm34, %v214, 0
  %v227 = vsel %vm34, %v215, 0
  %v230 = vsel %vm34, %v216, 0
  %232 = vmatprep.subr.mxu0 0.0
  %233 = vmatpush1.xpose.msra.mxu0 %v221
  %234 = vmatprep.subr.mxu0 0.0
  %235 = vmatpush1.xpose.msra.mxu0 %v224
  %236 = vmatprep.subr.mxu0 0.0
  %237 = vmatpush1.xpose.msra.mxu0 %v227
  %238 = vmatprep.subr.mxu0 0.0
  %239 = vmatpush1.xpose.msra.mxu0 %v230
  %240 = vmatprep.subr.mxu0 0.0
  %241 = vmatpush1.xpose.msra.mxu0 0.0
  %242 = vmatprep.subr.mxu0 0.0
  %243 = vmatpush1.xpose.msra.mxu0 0.0
  %244 = vmatprep.subr.mxu0 0.0
  %245 = vmatpush1.xpose.msra.mxu0 0.0
  %246 = vmatprep.subr.mxu0 0.0
  %247 = vmatpush1.xpose.msra.mxu0 0.0
  %248 = vmatprep.subr.mxu0 0.0
  %249 = vmatpush1.xpose.msra.mxu0 0.0
  %250 = vmatprep.subr.mxu0 0.0
  %251 = vmatpush1.xpose.msra.mxu0 0.0
  %252 = vmatprep.subr.mxu0 0.0
  %253 = vmatpush1.xpose.msra.mxu0 0.0
  %254 = vmatprep.subr.mxu0 0.0
  %255 = vmatpush1.xpose.msra.mxu0 0.0
  %256 = vmatprep.subr.mxu0 0.0
  %257 = vmatpush1.xpose.msra.mxu0 0.0
  %258 = vmatprep.subr.mxu0 0.0
  %259 = vmatpush1.xpose.msra.mxu0 0.0
  %260 = vmatprep.subr.mxu0 0.0
  %261 = vmatpush1.xpose.msra.mxu0 0.0
  %262 = vmatprep.subr.mxu0 0.0
  %263 = vmatpush1.xpose.msra.mxu0 0.0
  %264 = vmatprep.subr.mxu0 0.0
  %265 = vmatpush1.xpose.msra.mxu0 0.0
  %266 = vmatprep.subr.mxu0 0.0
  %267 = vmatpush1.xpose.msra.mxu0 0.0
  %268 = vmatprep.subr.mxu0 0.0
  %269 = vmatpush1.xpose.msra.mxu0 0.0
  %270 = vmatprep.subr.mxu0 0.0
  %271 = vmatpush1.xpose.msra.mxu0 0.0
  %272 = vmatprep.subr.mxu0 0.0
  %273 = vmatpush1.xpose.msra.mxu0 0.0
  %274 = vmatprep.subr.mxu0 0.0
  %275 = vmatpush1.xpose.msra.mxu0 0.0
  %276 = vmatprep.subr.mxu0 0.0
  %277 = vmatpush1.xpose.msra.mxu0 0.0
  %278 = vmatprep.subr.mxu0 0.0
  %279 = vmatpush1.xpose.msra.mxu0 0.0
  %280 = vmatprep.subr.mxu0 0.0
  %281 = vmatpush1.xpose.msra.mxu0 0.0
  %282 = vmatprep.subr.mxu0 0.0
  %283 = vmatpush1.xpose.msra.mxu0 0.0
  %284 = vmatprep.subr.mxu0 0.0
  %285 = vmatpush1.xpose.msra.mxu0 0.0
  %286 = vmatprep.subr.mxu0 0.0
  %287 = vmatpush1.xpose.msra.mxu0 0.0
  %288 = vmatprep.subr.mxu0 0.0
  %289 = vmatpush1.xpose.msra.mxu0 0.0
  %290 = vmatprep.subr.mxu0 0.0
  %291 = vmatpush1.xpose.msra.mxu0 0.0
  %292 = vmatprep.subr.mxu0 0.0
  %293 = vmatpush1.xpose.msra.mxu0 0.0
  %294 = vmatprep.subr.mxu0 0.0
  %295 = vmatpush1.xpose.msra.mxu0 0.0
  %296 = vmatprep.mubr.f32.mxu0 0.0
  %297 = vmatmul.mubr.f32.gmra.mrb[0].mxu0 %v218
  %v298 = vpop.f32.mrb[0].mxu0
  %v299 = vadd.f32 0.0, %v298
  %v300 = vpop.f32.mrb[0].mxu0
  %301 = vdwg.mxu0
  %vm302 = vcmp.gt.f32.partialorder %v33, 0.5
  %v303 = vsel %vm302, %v299, -1e+30
  %vm304 = vcmask 237568
  %v305 = vsel %vm304, %v303, -inf
  %306 = vmax.xlane.f32.xlu0 %v305
  %v307 = vpop.xlane.xlu0 %306
  %v308 = vsub.f32 %v303, %v307
  %v309 = vmul.f32 %v308, 1.442695
  %v310 = vpow.pop %v309
  %v311 = vsel %vm304, %v310, 0.0
  %312 = vadd.xlane.f32.xlu0 %v311
  %v313 = vpop.xlane.xlu0 %312
  %v314 = vlog2.pop %v313
  %v315 = vmul.f32 %v314, 0.6931472
  %v316 = vsub.f32 %v308, %v315
  %v317 = vmul.f32 %v316, %v33
  %vm318 = vcmask 244736
  %v320 = vsel %vm318, %v317, 0
  %vm322 = vcmask 1045504
  %v323 = vsel %vm322, %v23, 0
  %325 = vmatprep.subr.mxu0 0.0
  %326 = vmatpush1.msra.mxu0 %v20
  %327 = vmatprep.subr.mxu0 0.0
  %328 = vmatpush1.msra.mxu0 %v21
  %329 = vmatprep.subr.mxu0 0.0
  %330 = vmatpush1.msra.mxu0 %v22
  %331 = vmatprep.subr.mxu0 0.0
  %332 = vmatpush1.msra.mxu0 %v323
  %333 = vmatprep.subr.mxu0 0.0
  %334 = vmatpush1.msra.mxu0 0.0
  %335 = vmatprep.subr.mxu0 0.0
  %336 = vmatpush1.msra.mxu0 0.0
  %337 = vmatprep.subr.mxu0 0.0
  %338 = vmatpush1.msra.mxu0 0.0
  %339 = vmatprep.subr.mxu0 0.0
  %340 = vmatpush1.msra.mxu0 0.0
  %341 = vmatprep.subr.mxu0 0.0
  %342 = vmatpush1.msra.mxu0 0.0
  %343 = vmatprep.subr.mxu0 0.0
  %344 = vmatpush1.msra.mxu0 0.0
  %345 = vmatprep.subr.mxu0 0.0
  %346 = vmatpush1.msra.mxu0 0.0
  %347 = vmatprep.subr.mxu0 0.0
  %348 = vmatpush1.msra.mxu0 0.0
  %349 = vmatprep.subr.mxu0 0.0
  %350 = vmatpush1.msra.mxu0 0.0
  %351 = vmatprep.subr.mxu0 0.0
  %352 = vmatpush1.msra.mxu0 0.0
  %353 = vmatprep.subr.mxu0 0.0
  %354 = vmatpush1.msra.mxu0 0.0
  %355 = vmatprep.subr.mxu0 0.0
  %356 = vmatpush1.msra.mxu0 0.0
  %357 = vmatprep.subr.mxu0 0.0
  %358 = vmatpush1.msra.mxu0 0.0
  %359 = vmatprep.subr.mxu0 0.0
  %360 = vmatpush1.msra.mxu0 0.0
  %361 = vmatprep.subr.mxu0 0.0
  %362 = vmatpush1.msra.mxu0 0.0
  %363 = vmatprep.subr.mxu0 0.0
  %364 = vmatpush1.msra.mxu0 0.0
  %365 = vmatprep.subr.mxu0 0.0
  %366 = vmatpush1.msra.mxu0 0.0
  %367 = vmatprep.subr.mxu0 0.0
  %368 = vmatpush1.msra.mxu0 0.0
  %369 = vmatprep.subr.mxu0 0.0
  %370 = vmatpush1.msra.mxu0 0.0
  %371 = vmatprep.subr.mxu0 0.0
  %372 = vmatpush1.msra.mxu0 0.0
  %373 = vmatprep.subr.mxu0 0.0
  %374 = vmatpush1.msra.mxu0 0.0
  %375 = vmatprep.subr.mxu0 0.0
  %376 = vmatpush1.msra.mxu0 0.0
  %377 = vmatprep.subr.mxu0 0.0
  %378 = vmatpush1.msra.mxu0 0.0
  %379 = vmatprep.subr.mxu0 0.0
  %380 = vmatpush1.msra.mxu0 0.0
  %381 = vmatprep.subr.mxu0 0.0
  %382 = vmatpush1.msra.mxu0 0.0
  %383 = vmatprep.subr.mxu0 0.0
  %384 = vmatpush1.msra.mxu0 0.0
  %385 = vmatprep.subr.mxu0 0.0
  %386 = vmatpush1.msra.mxu0 0.0
  %387 = vmatprep.subr.mxu0 0.0
  %388 = vmatpush1.msra.mxu0 0.0
  %389 = vmatprep.mubr.f32.mxu0 0.0
  %390 = vmatmul.mubr.f32.gmra.mrb[0].mxu0 %v320
  %v391 = vpop.f32.mrb[0].mxu0
  %v392 = vadd.f32 0.0, %v391
  %v393 = vpop.f32.mrb[0].mxu0
  %394 = vdwg.mxu0
  %395 = vst [vmem:[%s5] sm:$0x1] 0.0
  %396 = vst.msk [vmem:[%s5] sm:$0x1] %vm304, %v316
  %398 = vrot.lane.b32.xlu0 %v392, 32
  %v399 = vpop.permute.xlu0 %398
  %vm401 = vcmask 516352
  %402 = vst.msk [vmem:[%s5] sm:$0x1] %vm401, %v399
  // Predicated region
  $region22: #{context_atten.1} parent=0 // pred_check
    _
  $region23: #{context_atten.1} parent=0 // pred_check_branch
    %404 = sbr.rel (0) target = $region25
  $region24: #{context_atten.1} parent=0 // pred_region
    _
  $region25: #{context_atten.1} parent=0 // pred_fallthru
    _
  // Predicated region
  $region26: #{context_atten.1} parent=0 // pred_check
    _
  $region27: #{context_atten.1} parent=0 // pred_check_branch
    %406 = sbr.rel (0) target = $region29
  $region28: #{context_atten.1} parent=0 // pred_region
    _
  $region29: #{context_atten.1} parent=0 // pred_fallthru
    _

</llo_original>
